<compile_context>
chip_gen: v7x
topology: tpu7x:2x2x1
jax: 0.10.0
libtpu: 0.0.40
codegen_flags: <defaults>
</compile_context>

<pallas_src>
import jax
import jax.numpy as jnp
from jax.experimental import pallas as pl
from jax.experimental.pallas import tpu as pltpu

_LANE = 128
_SUBLANE = 8


def _round_up(n, m):
    return ((n + m - 1) // m) * m


def _pad_to(a, shape):
    pads = [(0, t - s) for s, t in zip(a.shape, shape)]
    return jnp.pad(a, pads)


def _mlp_kernel(x_ref, w1_ref, b1_ref, w2_ref, b2_ref, alpha_ref,
                w3_ref, b3_ref, o_ref):
    x = x_ref[...]                                             # (TB, Dp) bf16

    # fc1 + ReLU   (bf16 MXU matmul, f32 accumulate)
    a1 = jnp.dot(x, w1_ref[...], preferred_element_type=jnp.float32)
    a1 = a1 + b1_ref[...]                                      # (TB, Hp) f32
    h1 = jnp.maximum(a1, 0.0)

    # Dropout(p=0.2) in eval mode == identity
    # TODO(synk): training-mode dropout (mask + 1/(1-p) scaling) not emitted.

    # fc2 + PReLU (single shared alpha, read from SMEM)
    a2 = jnp.dot(h1.astype(jnp.bfloat16), w2_ref[...],
                 preferred_element_type=jnp.float32)
    a2 = a2 + b2_ref[...]                                      # (TB, 128) f32
    alpha = alpha_ref[0, 0]
    h2 = jnp.where(a2 > 0, a2, alpha * a2)

    # out + Sigmoid (lane-dense padded output slab; col 0 is the real output)
    a3 = jnp.dot(h2.astype(jnp.bfloat16), w3_ref[...],
                 preferred_element_type=jnp.float32)
    a3 = a3 + b3_ref[...]                                      # (TB, 128) f32
    o_ref[...] = jax.nn.sigmoid(a3)                            # exp on EUP


def net_forward(x, params, *, block_batch=512):
    """x: (B, D_in) f32. params: dict of f32 arrays (weights pre-transposed to
    (in_features, out_features)). Returns (B, 1) f32."""
    B, D_in = x.shape
    H = params["w1"].shape[1]
    H2 = params["w2"].shape[1]
    D_out = params["w3"].shape[1]

    # Lane-pad every feature dim to 128 (mathematically identity: padded
    # hidden units are exactly 0 through ReLU/PReLU and hit zero weights).
    Dp = _round_up(D_in, _LANE)
    Hp = _round_up(H, _LANE)
    H2p = _round_up(H2, _LANE)
    Op = _round_up(D_out, _LANE)

    # Batch tile: multiple of the 8-row sublane, padded batch divisible by it.
    TB = min(block_batch, _round_up(B, _SUBLANE))
    Bp = _round_up(B, TB)

    xp = _pad_to(x, (Bp, Dp)).astype(jnp.bfloat16)
    w1 = _pad_to(params["w1"], (Dp, Hp)).astype(jnp.bfloat16)
    w2 = _pad_to(params["w2"], (Hp, H2p)).astype(jnp.bfloat16)
    w3 = _pad_to(params["w3"], (H2p, Op)).astype(jnp.bfloat16)
    b1 = _pad_to(params["b1"], (1, Hp))
    b2 = _pad_to(params["b2"], (1, H2p))
    b3 = _pad_to(params["b3"], (1, Op))
    alpha = params["alpha"]                                    # (1, 1) f32

    # Weights/biases: constant index_map -> VMEM-resident across all batch tiles.
    resident = lambda shape: pl.BlockSpec(shape, lambda i: (0,) * len(shape))

    out = pl.pallas_call(
        _mlp_kernel,
        out_shape=jax.ShapeDtypeStruct((Bp, Op), jnp.float32),
        grid_spec=pltpu.PrefetchScalarGridSpec(
            num_scalar_prefetch=0,
            grid=(Bp // TB,),
            in_specs=[
                pl.BlockSpec((TB, Dp), lambda i: (i, 0)),      # x (batch-tiled)
                resident((Dp, Hp)),                            # w1
                resident((1, Hp)),                             # b1
                resident((Hp, H2p)),                           # w2
                resident((1, H2p)),                            # b2
                pl.BlockSpec(memory_space=pltpu.SMEM),         # alpha scalar
                resident((H2p, Op)),                           # w3
                resident((1, Op)),                             # b3
            ],
            out_specs=pl.BlockSpec((TB, Op), lambda i: (i, 0)),
        ),
        compiler_params=pltpu.CompilerParams(
            dimension_semantics=("parallel",),                 # v7x: 2 TCs
            vmem_limit_bytes=32 * 1024 * 1024,                 # explicit, v7x-safe
        ),
    )(xp, w1, b1, w2, b2, alpha, w3, b3)

    # Drop batch padding and padded output lanes.
    return out[:B, :D_out]


def init_params(key, input_shape, hidden_layer):
    """Deterministic init mimicking PyTorch nn.Linear defaults
    (uniform(-1/sqrt(fan_in), 1/sqrt(fan_in))) and nn.PReLU default alpha=0.25.
    Weights stored transposed: (in_features, out_features)."""
    ks = jax.random.split(key, 6)

    def linear(kw, kb, fan_in, fan_out):
        bound = 1.0 / (fan_in ** 0.5)
        w = jax.random.uniform(kw, (fan_in, fan_out), jnp.float32, -bound, bound)
        b = jax.random.uniform(kb, (1, fan_out), jnp.float32, -bound, bound)
        return w, b

    w1, b1 = linear(ks[0], ks[1], input_shape, hidden_layer)
    w2, b2 = linear(ks[2], ks[3], hidden_layer, 100)
    w3, b3 = linear(ks[4], ks[5], 100, 1)
    alpha = jnp.full((1, 1), 0.25, jnp.float32)
    return dict(w1=w1, b1=b1, w2=w2, b2=b2, alpha=alpha, w3=w3, b3=b3)


if __name__ == "__main__":
    key = jax.random.PRNGKey(0)
    k_x, k_p = jax.random.split(key)

    batch, input_shape, hidden_layer = 8, 32, 64
    x = jax.random.normal(k_x, (batch, input_shape), jnp.float32)
    params = init_params(k_p, input_shape, hidden_layer)

    y = net_forward(x, params)
    jax.block_until_ready(y)

    # shape / range sanity
    assert y.shape == (batch, 1)
    assert bool(jnp.all((y >= 0.0) & (y <= 1.0)))
    assert bool(jnp.all(jnp.isfinite(y)))

    # Reference 1: mimic the kernel's bf16-operand / f32-accumulate math exactly.
    alpha = params["alpha"][0, 0]
    xb = x.astype(jnp.bfloat16)
    a1 = jnp.dot(xb, params["w1"].astype(jnp.bfloat16),
                 preferred_element_type=jnp.float32) + params["b1"]
    h1 = jnp.maximum(a1, 0.0)
    a2 = jnp.dot(h1.astype(jnp.bfloat16), params["w2"].astype(jnp.bfloat16),
                 preferred_element_type=jnp.float32) + params["b2"]
    h2 = jnp.where(a2 > 0, a2, alpha * a2)
    a3 = jnp.dot(h2.astype(jnp.bfloat16), params["w3"].astype(jnp.bfloat16),
                 preferred_element_type=jnp.float32) + params["b3"]
    ref_bf16 = jax.nn.sigmoid(a3)
    assert bool(jnp.allclose(y, ref_bf16, atol=1e-4, rtol=1e-4))

    # Reference 2: pure-f32 eval-mode PyTorch semantics (loose tol for bf16 MXU).
    a1f = jnp.maximum(x @ params["w1"] + params["b1"], 0.0)
    a2f = a1f @ params["w2"] + params["b2"]
    h2f = jnp.where(a2f > 0, a2f, alpha * a2f)
    ref_f32 = jax.nn.sigmoid(h2f @ params["w3"] + params["b3"])
    assert bool(jnp.allclose(y, ref_f32, atol=5e-2, rtol=5e-2))

    print("KERNEL_OK")
</pallas_src>

<mosaic_0001>
module attributes {stable_mosaic.version = 11 : i64} {
  func.func @_mlp_kernel(%arg0: i32, %arg1: memref<8x128xbf16, #tpu.memory_space<vmem>>, %arg2: memref<128x128xbf16, #tpu.memory_space<vmem>>, %arg3: memref<1x128xf32, #tpu.memory_space<vmem>>, %arg4: memref<128x128xbf16, #tpu.memory_space<vmem>>, %arg5: memref<1x128xf32, #tpu.memory_space<vmem>>, %arg6: memref<1x1xf32, #tpu.memory_space<smem>>, %arg7: memref<128x128xbf16, #tpu.memory_space<vmem>>, %arg8: memref<1x128xf32, #tpu.memory_space<vmem>>, %arg9: memref<8x128xf32, #tpu.memory_space<vmem>>) attributes {dimension_semantics = [#tpu.dimension_semantics<parallel>], iteration_bounds = array<i64: 1>, scalar_prefetch = 0 : i64, scratch_operands = 0 : i64, tpu.core_type = #tpu.core_type<tc>, window_params = [{transform_indices = @transform_0, window_bounds = array<i64: 8, 128>}, {pipeline_mode = #tpu.pipeline_mode<synchronous>, transform_indices = @transform_1, window_bounds = array<i64: 128, 128>}, {pipeline_mode = #tpu.pipeline_mode<synchronous>, transform_indices = @transform_2, window_bounds = array<i64: 1, 128>}, {pipeline_mode = #tpu.pipeline_mode<synchronous>, transform_indices = @transform_3, window_bounds = array<i64: 128, 128>}, {pipeline_mode = #tpu.pipeline_mode<synchronous>, transform_indices = @transform_4, window_bounds = array<i64: 1, 128>}, {transform_indices = @transform_5, window_bounds = array<i64: 1, 1>}, {pipeline_mode = #tpu.pipeline_mode<synchronous>, transform_indices = @transform_6, window_bounds = array<i64: 128, 128>}, {pipeline_mode = #tpu.pipeline_mode<synchronous>, transform_indices = @transform_7, window_bounds = array<i64: 1, 128>}, {transform_indices = @transform_8, window_bounds = array<i64: 8, 128>}]} {
    %c0 = arith.constant 0 : index
    %c0_0 = arith.constant 0 : index
    %0 = vector.load %arg1[%c0, %c0_0] : memref<8x128xbf16, #tpu.memory_space<vmem>>, vector<8x128xbf16>
    %c0_1 = arith.constant 0 : index
    %c0_2 = arith.constant 0 : index
    %1 = vector.load %arg2[%c0_1, %c0_2] : memref<128x128xbf16, #tpu.memory_space<vmem>>, vector<128x128xbf16>
    %cst = arith.constant dense<0.000000e+00> : vector<8x128xf32>
    %2 = tpu.matmul %0, %1, %cst {dimension_numbers = #tpu.dot_dimension_numbers<[1], [0], [0], [1], [0, 0, 1, 1], [], []>} : vector<8x128xbf16>, vector<128x128xbf16>, vector<8x128xf32> -> vector<8x128xf32>
    %c0_3 = arith.constant 0 : index
    %c0_4 = arith.constant 0 : index
    %3 = vector.load %arg3[%c0_3, %c0_4] : memref<1x128xf32, #tpu.memory_space<vmem>>, vector<1x128xf32>
    %4 = vector.broadcast %3 : vector<1x128xf32> to vector<8x128xf32>
    %5 = arith.addf %2, %4 : vector<8x128xf32>
    %cst_5 = arith.constant 0.000000e+00 : f32
    %6 = vector.broadcast %cst_5 : f32 to vector<8x128xf32>
    %7 = arith.maximumf %5, %6 : vector<8x128xf32>
    %8 = arith.truncf %7 : vector<8x128xf32> to vector<8x128xbf16>
    %c0_6 = arith.constant 0 : index
    %c0_7 = arith.constant 0 : index
    %9 = vector.load %arg4[%c0_6, %c0_7] : memref<128x128xbf16, #tpu.memory_space<vmem>>, vector<128x128xbf16>
    %cst_8 = arith.constant dense<0.000000e+00> : vector<8x128xf32>
    %10 = tpu.matmul %8, %9, %cst_8 {dimension_numbers = #tpu.dot_dimension_numbers<[1], [0], [0], [1], [0, 0, 1, 1], [], []>} : vector<8x128xbf16>, vector<128x128xbf16>, vector<8x128xf32> -> vector<8x128xf32>
    %c0_9 = arith.constant 0 : index
    %c0_10 = arith.constant 0 : index
    %11 = vector.load %arg5[%c0_9, %c0_10] : memref<1x128xf32, #tpu.memory_space<vmem>>, vector<1x128xf32>
    %12 = vector.broadcast %11 : vector<1x128xf32> to vector<8x128xf32>
    %13 = arith.addf %10, %12 : vector<8x128xf32>
    %c0_11 = arith.constant 0 : index
    %c0_12 = arith.constant 0 : index
    %14 = memref.load %arg6[%c0_11, %c0_12] : memref<1x1xf32, #tpu.memory_space<smem>>
    %cst_13 = arith.constant 0.000000e+00 : f32
    %15 = vector.broadcast %cst_13 : f32 to vector<8x128xf32>
    %16 = arith.cmpf ogt, %13, %15 : vector<8x128xf32>
    %17 = vector.broadcast %14 : f32 to vector<8x128xf32>
    %18 = arith.mulf %17, %13 : vector<8x128xf32>
    %19 = arith.select %16, %13, %18 : vector<8x128xi1>, vector<8x128xf32>
    %20 = arith.truncf %19 : vector<8x128xf32> to vector<8x128xbf16>
    %c0_14 = arith.constant 0 : index
    %c0_15 = arith.constant 0 : index
    %21 = vector.load %arg7[%c0_14, %c0_15] : memref<128x128xbf16, #tpu.memory_space<vmem>>, vector<128x128xbf16>
    %cst_16 = arith.constant dense<0.000000e+00> : vector<8x128xf32>
    %22 = tpu.matmul %20, %21, %cst_16 {dimension_numbers = #tpu.dot_dimension_numbers<[1], [0], [0], [1], [0, 0, 1, 1], [], []>} : vector<8x128xbf16>, vector<128x128xbf16>, vector<8x128xf32> -> vector<8x128xf32>
    %c0_17 = arith.constant 0 : index
    %c0_18 = arith.constant 0 : index
    %23 = vector.load %arg8[%c0_17, %c0_18] : memref<1x128xf32, #tpu.memory_space<vmem>>, vector<1x128xf32>
    %24 = vector.broadcast %23 : vector<1x128xf32> to vector<8x128xf32>
    %25 = arith.addf %22, %24 : vector<8x128xf32>
    %26 = arith.negf %25 : vector<8x128xf32>
    %27 = math.exp %26 : vector<8x128xf32>
    %cst_19 = arith.constant 1.000000e+00 : f32
    %28 = vector.broadcast %cst_19 : f32 to vector<8x128xf32>
    %29 = arith.addf %28, %27 : vector<8x128xf32>
    %30 = arith.divf %28, %29 : vector<8x128xf32>
    %c0_20 = arith.constant 0 : index
    %c0_21 = arith.constant 0 : index
    %31 = vector.load %arg9[%c0_20, %c0_21] : memref<8x128xf32, #tpu.memory_space<vmem>>, vector<8x128xf32>
    tpu.vector_store %arg9[%c0_20, %c0_21], %30 {strides = array<i32>} : memref<8x128xf32, #tpu.memory_space<vmem>>, vector<8x128xf32>,
    return
  }
  func.func @transform_0(%arg0: i32) -> (i32, i32) {
    %c0_i32 = arith.constant 0 : i32
    %c0_i32_0 = arith.constant 0 : i32
    return %arg0, %c0_i32 : i32, i32
  }
  func.func @transform_1(%arg0: i32) -> (i32, i32) {
    %c0_i32 = arith.constant 0 : i32
    %c0_i32_0 = arith.constant 0 : i32
    %c0_i32_1 = arith.constant 0 : i32
    return %c0_i32, %c0_i32_0 : i32, i32
  }
  func.func @transform_2(%arg0: i32) -> (i32, i32) {
    %c0_i32 = arith.constant 0 : i32
    %c0_i32_0 = arith.constant 0 : i32
    %c0_i32_1 = arith.constant 0 : i32
    return %c0_i32, %c0_i32_0 : i32, i32
  }
  func.func @transform_3(%arg0: i32) -> (i32, i32) {
    %c0_i32 = arith.constant 0 : i32
    %c0_i32_0 = arith.constant 0 : i32
    %c0_i32_1 = arith.constant 0 : i32
    return %c0_i32, %c0_i32_0 : i32, i32
  }
  func.func @transform_4(%arg0: i32) -> (i32, i32) {
    %c0_i32 = arith.constant 0 : i32
    %c0_i32_0 = arith.constant 0 : i32
    %c0_i32_1 = arith.constant 0 : i32
    return %c0_i32, %c0_i32_0 : i32, i32
  }
  func.func @transform_5(%arg0: i32) -> (i32, i32) {
    %c0_i32 = arith.constant 0 : i32
    %c0_i32_0 = arith.constant 0 : i32
    %c0_i32_1 = arith.constant 0 : i32
    return %c0_i32, %c0_i32_0 : i32, i32
  }
  func.func @transform_6(%arg0: i32) -> (i32, i32) {
    %c0_i32 = arith.constant 0 : i32
    %c0_i32_0 = arith.constant 0 : i32
    %c0_i32_1 = arith.constant 0 : i32
    return %c0_i32, %c0_i32_0 : i32, i32
  }
  func.func @transform_7(%arg0: i32) -> (i32, i32) {
    %c0_i32 = arith.constant 0 : i32
    %c0_i32_0 = arith.constant 0 : i32
    %c0_i32_1 = arith.constant 0 : i32
    return %c0_i32, %c0_i32_0 : i32, i32
  }
  func.func @transform_8(%arg0: i32) -> (i32, i32) {
    %c0_i32 = arith.constant 0 : i32
    %c0_i32_0 = arith.constant 0 : i32
    return %arg0, %c0_i32 : i32, i32
  }
}

</mosaic_0001>

<llo_original>
// kernel: tpu_custom_call.1
$region0: #{tpu_custom_call.1}
  #allocation0 [shape = 'u32[]', space=smem, size = 0x4, offset = 0x4, fixed_abs, tag = 'smem constant byte address 0x4 - core index']
  #allocation1 [shape = 'u32[144,128]{1,0:T(1,128)}', space=vmem, size = 0x12000, scoped, tag = 'internal scratch']
  #allocation2 [shape = 'f32[1,1]{1,0:T(1,128)S(6)}', space=smem, size = 0x200, scoped, tag = 'scoped memory for tpu_custom_call.1']
  %s0 = inlined_call_operand.hbm [shape: bf16[8,128], index: 0, kind: input, shape index: {}]
  %s1 = inlined_call_operand.hbm [shape: bf16[128,128], index: 1, kind: input, shape index: {}]
  %s2 = inlined_call_operand.vmem [shape: f32[1,128], index: 2, kind: input, shape index: {}]
  %s3 = inlined_call_operand.hbm [shape: bf16[128,128], index: 3, kind: input, shape index: {}]
  %s4 = inlined_call_operand.vmem [shape: f32[1,128], index: 4, kind: input, shape index: {}]
  %s5 = inlined_call_operand.<no memory space> [shape: f32[1,1], index: 5, kind: input, shape index: {}]
  %s6 = inlined_call_operand.hbm [shape: bf16[128,128], index: 6, kind: input, shape index: {}]
  %s7 = inlined_call_operand.vmem [shape: f32[1,128], index: 7, kind: input, shape index: {}]
  %s8 = inlined_call_operand.hbm [shape: f32[8,128], index: 8, kind: output, shape index: {}]
  %s9 = sld [smem:[#allocation0]]
  $region58: #{tpu_custom_call.1} parent=0
    _
  %s11 = ssub.s32 1, %s9
  %s12 = scalar_select 0, %s11, %s9
  %13 = sst [smem:[#allocation2]] %s5
  $region1: #{tpu_custom_call.1} parent=0
    #allocation3 [shape = 'u8[2048]{0}', space=vmem, size = 0x800, scoped, tag = 'input window, operand 0, single buffered']
    #allocation4 [shape = 's32[1]{0}', space=sflag, size = 0x4, scoped, tag = 'scoped memory for tpu_custom_call.1']
    #allocation5 [shape = 's32[1]{0}', space=sflag, size = 0x4, scoped, tag = 'scoped memory for tpu_custom_call.1']
    #allocation6 [shape = 'u8[32768]{0}', space=vmem, size = 0x8000, scoped, tag = 'input window, operand 1, single buffered']
    #allocation7 [shape = 's32[1]{0}', space=sflag, size = 0x4, scoped, tag = 'scoped memory for tpu_custom_call.1']
    #allocation8 [shape = 'u8[32768]{0}', space=vmem, size = 0x8000, scoped, tag = 'input window, operand 3, single buffered']
    #allocation9 [shape = 'u8[32768]{0}', space=vmem, size = 0x8000, scoped, tag = 'input window, operand 6, single buffered']
    #allocation10 [shape = 's32[1]{0}', space=sflag, size = 0x4, scoped, tag = 'scoped memory for tpu_custom_call.1']
    #allocation11 [shape = 'u8[4096]{0}', space=vmem, size = 0x1000, scoped, tag = 'output window, operand 0, single buffered']
    %14 = vsyncpa [#allocation4], 0
    %15 = vsyncpa [#allocation7], 0
    %16 = vsyncpa [#allocation10], 0
    %17 = vsyncpa [#allocation5], 0
    // Predicated region
    $region2: #{tpu_custom_call.1} parent=1 // pred_check
      _
    $region3: #{tpu_custom_call.1} parent=1 // pred_check_branch
      %19 = sbr.rel (0) target = $region5
    $region4: #{tpu_custom_call.1} parent=1 // pred_region
      %s21 = ssub.s32 64, 64
      %22 = vsyncadd [#allocation4], %s21
      %s24 = sshll.u32 [#allocation3], 4
      %s25 = int_to_ptr.vmem [resolvable:$true] %s24
      %27 = dma.hbm_to_vmem [thread:$0]  %s0, 64, %s25, [#allocation4]
    $region5: #{tpu_custom_call.1} parent=1 // pred_fallthru
      _
    // Predicated region
    $region6: #{tpu_custom_call.1} parent=1 // pred_check
      _
    $region7: #{tpu_custom_call.1} parent=1 // pred_check_branch
      %29 = sbr.rel (0) target = $region9
    $region8: #{tpu_custom_call.1} parent=1 // pred_region
      %s31 = ssub.s32 1024, 1024
      %32 = vsyncadd [#allocation7], %s31
      %s33 = sshll.u32 [#allocation6], 4
      %s34 = int_to_ptr.vmem [resolvable:$true] %s33
      %39 = dma.hbm_to_vmem [thread:$0]  %s1, 1024, %s34, [#allocation7], 64, 64, 4
    $region9: #{tpu_custom_call.1} parent=1 // pred_fallthru
      _
    // Predicated region
    $region10: #{tpu_custom_call.1} parent=1 // pred_check
      _
    $region11: #{tpu_custom_call.1} parent=1 // pred_check_branch
      %41 = sbr.rel (0) target = $region13
    $region12: #{tpu_custom_call.1} parent=1 // pred_region
      _
    $region13: #{tpu_custom_call.1} parent=1 // pred_fallthru
      _
    // Predicated region
    $region14: #{tpu_custom_call.1} parent=1 // pred_check
      _
    $region15: #{tpu_custom_call.1} parent=1 // pred_check_branch
      %43 = sbr.rel (0) target = $region17
    $region16: #{tpu_custom_call.1} parent=1 // pred_region
      %s45 = ssub.s32 1024, 1024
      %46 = vsyncadd [#allocation7], %s45
      %s47 = sshll.u32 [#allocation8], 4
      %s48 = int_to_ptr.vmem [resolvable:$true] %s47
      %53 = dma.hbm_to_vmem [thread:$0]  %s3, 1024, %s48, [#allocation7], 64, 64, 4
    $region17: #{tpu_custom_call.1} parent=1 // pred_fallthru
      _
    // Predicated region
    $region18: #{tpu_custom_call.1} parent=1 // pred_check
      _
    $region19: #{tpu_custom_call.1} parent=1 // pred_check_branch
      %55 = sbr.rel (0) target = $region21
    $region20: #{tpu_custom_call.1} parent=1 // pred_region
      _
    $region21: #{tpu_custom_call.1} parent=1 // pred_fallthru
      _
    // Predicated region
    $region22: #{tpu_custom_call.1} parent=1 // pred_check
      _
    $region23: #{tpu_custom_call.1} parent=1 // pred_check_branch
      %57 = sbr.rel (0) target = $region25
    $region24: #{tpu_custom_call.1} parent=1 // pred_region
      _
    $region25: #{tpu_custom_call.1} parent=1 // pred_fallthru
      _
    // Predicated region
    $region26: #{tpu_custom_call.1} parent=1 // pred_check
      _
    $region27: #{tpu_custom_call.1} parent=1 // pred_check_branch
      %59 = sbr.rel (0) target = $region29
    $region28: #{tpu_custom_call.1} parent=1 // pred_region
      %s61 = ssub.s32 1024, 1024
      %62 = vsyncadd [#allocation10], %s61
      %s63 = sshll.u32 [#allocation9], 4
      %s64 = int_to_ptr.vmem [resolvable:$true] %s63
      %69 = dma.hbm_to_vmem [thread:$0]  %s6, 1024, %s64, [#allocation10], 64, 64, 4
    $region29: #{tpu_custom_call.1} parent=1 // pred_fallthru
      _
    // Predicated region
    $region30: #{tpu_custom_call.1} parent=1 // pred_check
      _
    $region31: #{tpu_custom_call.1} parent=1 // pred_check_branch
      %71 = sbr.rel (0) target = $region33
    $region32: #{tpu_custom_call.1} parent=1 // pred_region
      _
    $region33: #{tpu_custom_call.1} parent=1 // pred_fallthru
      _
    // Predicated region
    $region34: #{tpu_custom_call.1} parent=1 // pred_check
      _
    $region35: #{tpu_custom_call.1} parent=1 // pred_check_branch
      %73 = sbr.rel (0) target = $region37
    $region36: #{tpu_custom_call.1} parent=1 // pred_region
      %74 = dma.done [#allocation4], 64
    $region37: #{tpu_custom_call.1} parent=1 // pred_fallthru
      _
    // Predicated region
    $region38: #{tpu_custom_call.1} parent=1 // pred_check
      _
    $region39: #{tpu_custom_call.1} parent=1 // pred_check_branch
      %76 = sbr.rel (0) target = $region41
    $region40: #{tpu_custom_call.1} parent=1 // pred_region
      %77 = dma.done [#allocation7], 1024
    $region41: #{tpu_custom_call.1} parent=1 // pred_fallthru
      _
    // Predicated region
    $region42: #{tpu_custom_call.1} parent=1 // pred_check
      _
    $region43: #{tpu_custom_call.1} parent=1 // pred_check_branch
      %79 = sbr.rel (0) target = $region45
    $region44: #{tpu_custom_call.1} parent=1 // pred_region
      %80 = dma.done [#allocation7], 1024
    $region45: #{tpu_custom_call.1} parent=1 // pred_fallthru
      _
    // Predicated region
    $region46: #{tpu_custom_call.1} parent=1 // pred_check
      _
    $region47: #{tpu_custom_call.1} parent=1 // pred_check_branch
      %82 = sbr.rel (0) target = $region49
    $region48: #{tpu_custom_call.1} parent=1 // pred_region
      %83 = dma.done [#allocation10], 1024
    $region49: #{tpu_custom_call.1} parent=1 // pred_fallthru
      _
    %v85 = vld [vmem:[#allocation3] sm:$0xf]
    %v86 = vld [vmem:[#allocation6] sm:$0xf]
    %v87 = vld [vmem:[#allocation6 + $0x4] sm:$0xf]
    %v88 = vld [vmem:[#allocation6 + $0x8] sm:$0xf]
    %v89 = vld [vmem:[#allocation6 + $0xc] sm:$0xf]
    %v90 = vld [vmem:[#allocation6 + $0x10] sm:$0xf]
    %v91 = vld [vmem:[#allocation6 + $0x14] sm:$0xf]
    %v92 = vld [vmem:[#allocation6 + $0x18] sm:$0xf]
    %v93 = vld [vmem:[#allocation6 + $0x1c] sm:$0xf]
    %v94 = vld [vmem:[#allocation6 + $0x20] sm:$0xf]
    %v95 = vld [vmem:[#allocation6 + $0x24] sm:$0xf]
    %v96 = vld [vmem:[#allocation6 + $0x28] sm:$0xf]
    %v97 = vld [vmem:[#allocation6 + $0x2c] sm:$0xf]
    %v98 = vld [vmem:[#allocation6 + $0x30] sm:$0xf]
    %v99 = vld [vmem:[#allocation6 + $0x34] sm:$0xf]
    %v100 = vld [vmem:[#allocation6 + $0x38] sm:$0xf]
    %v101 = vld [vmem:[#allocation6 + $0x3c] sm:$0xf]
    %v102 = vld [vmem:[%s2] sm:$0x1]
    %v104 = vlaneseq
    %v105 = vshrl.u32 %v104, 7
    %v106 = vsub.s32 0, %v105
    %v107 = vrot.slane %v102, %v106
    %v125 = vunpack.c.l.b16 %v86
    %v126 = vunpack.c.l.b16 %v87
    %v127 = vunpack.c.l.b16 %v88
    %v128 = vunpack.c.l.b16 %v89
    %v129 = vunpack.c.l.b16 %v90
    %v130 = vunpack.c.l.b16 %v91
    %v131 = vunpack.c.l.b16 %v92
    %v132 = vunpack.c.l.b16 %v93
    %v133 = vunpack.c.l.b16 %v94
    %v134 = vunpack.c.l.b16 %v95
    %v135 = vunpack.c.l.b16 %v96
    %v136 = vunpack.c.l.b16 %v97
    %v137 = vunpack.c.l.b16 %v98
    %v138 = vunpack.c.l.b16 %v99
    %v139 = vunpack.c.l.b16 %v100
    %v140 = vunpack.c.l.b16 %v101
    %v141 = vpack.c.b16 %v126, %v125
    %v142 = vpack.c.b16 %v128, %v127
    %v143 = vpack.c.b16 %v130, %v129
    %v144 = vpack.c.b16 %v132, %v131
    %v145 = vpack.c.b16 %v134, %v133
    %v146 = vpack.c.b16 %v136, %v135
    %v147 = vpack.c.b16 %v138, %v137
    %v148 = vpack.c.b16 %v140, %v139
    %157 = vmatprep.subr.bf16.mxu0 0
    %158 = vmatpush1.bf16.msra.mxu0 %v141
    %159 = vmatprep.subr.bf16.mxu0 0
    %160 = vmatpush1.bf16.msra.mxu0 %v142
    %161 = vmatprep.subr.bf16.mxu0 0
    %162 = vmatpush1.bf16.msra.mxu0 %v143
    %163 = vmatprep.subr.bf16.mxu0 0
    %164 = vmatpush1.bf16.msra.mxu0 %v144
    %165 = vmatprep.subr.bf16.mxu0 0
    %166 = vmatpush1.bf16.msra.mxu0 %v145
    %167 = vmatprep.subr.bf16.mxu0 0
    %168 = vmatpush1.bf16.msra.mxu0 %v146
    %169 = vmatprep.subr.bf16.mxu0 0
    %170 = vmatpush1.bf16.msra.mxu0 %v147
    %171 = vmatprep.subr.bf16.mxu0 0
    %172 = vmatpush1.bf16.msra.mxu0 %v148
    %173 = vmatprep.subr.bf16.mxu0 0
    %174 = vmatpush1.bf16.msra.mxu0 0
    %175 = vmatprep.subr.bf16.mxu0 0
    %176 = vmatpush1.bf16.msra.mxu0 0
    %177 = vmatprep.subr.bf16.mxu0 0
    %178 = vmatpush1.bf16.msra.mxu0 0
    %179 = vmatprep.subr.bf16.mxu0 0
    %180 = vmatpush1.bf16.msra.mxu0 0
    %181 = vmatprep.subr.bf16.mxu0 0
    %182 = vmatpush1.bf16.msra.mxu0 0
    %183 = vmatprep.subr.bf16.mxu0 0
    %184 = vmatpush1.bf16.msra.mxu0 0
    %185 = vmatprep.subr.bf16.mxu0 0
    %186 = vmatpush1.bf16.msra.mxu0 0
    %187 = vmatprep.subr.bf16.mxu0 0
    %188 = vmatpush1.bf16.msra.mxu0 0
    %189 = vmatprep.mubr.bf16.mxu0 0
    %190 = vmatmul.mubr.bf16.gmra.mrb[0].mxu0 %v85
    %v191 = vpop.f32.mrb[0].mxu0
    %v192 = vadd.f32 %v107, %v191
    %v193 = vpop.f32.mrb[0].mxu0
    %v194 = vpop.f32.mrb[0].mxu0
    %v195 = vpop.f32.mrb[0].mxu0
    %196 = vdwg.mxu0
    %v197 = vmax.f32 %v192, 0.0
    %v198 = vpack.c.bf16 %v197, %v197
    %v199 = vld [vmem:[#allocation8] sm:$0xf]
    %v200 = vld [vmem:[#allocation8 + $0x4] sm:$0xf]
    %v201 = vld [vmem:[#allocation8 + $0x8] sm:$0xf]
    %v202 = vld [vmem:[#allocation8 + $0xc] sm:$0xf]
    %v203 = vld [vmem:[#allocation8 + $0x10] sm:$0xf]
    %v204 = vld [vmem:[#allocation8 + $0x14] sm:$0xf]
    %v205 = vld [vmem:[#allocation8 + $0x18] sm:$0xf]
    %v206 = vld [vmem:[#allocation8 + $0x1c] sm:$0xf]
    %v207 = vld [vmem:[#allocation8 + $0x20] sm:$0xf]
    %v208 = vld [vmem:[#allocation8 + $0x24] sm:$0xf]
    %v209 = vld [vmem:[#allocation8 + $0x28] sm:$0xf]
    %v210 = vld [vmem:[#allocation8 + $0x2c] sm:$0xf]
    %v211 = vld [vmem:[#allocation8 + $0x30] sm:$0xf]
    %v212 = vld [vmem:[#allocation8 + $0x34] sm:$0xf]
    %v213 = vld [vmem:[#allocation8 + $0x38] sm:$0xf]
    %v214 = vld [vmem:[#allocation8 + $0x3c] sm:$0xf]
    %v215 = vld [vmem:[%s4] sm:$0x1]
    %v217 = vlaneseq
    %v218 = vshrl.u32 %v217, 7
    %v219 = vsub.s32 0, %v218
    %v220 = vrot.slane %v215, %v219
    %v238 = vunpack.c.l.b16 %v199
    %v239 = vunpack.c.l.b16 %v200
    %v240 = vunpack.c.l.b16 %v201
    %v241 = vunpack.c.l.b16 %v202
    %v242 = vunpack.c.l.b16 %v203
    %v243 = vunpack.c.l.b16 %v204
    %v244 = vunpack.c.l.b16 %v205
    %v245 = vunpack.c.l.b16 %v206
    %v246 = vunpack.c.l.b16 %v207
    %v247 = vunpack.c.l.b16 %v208
    %v248 = vunpack.c.l.b16 %v209
    %v249 = vunpack.c.l.b16 %v210
    %v250 = vunpack.c.l.b16 %v211
    %v251 = vunpack.c.l.b16 %v212
    %v252 = vunpack.c.l.b16 %v213
    %v253 = vunpack.c.l.b16 %v214
    %v254 = vpack.c.b16 %v239, %v238
    %v255 = vpack.c.b16 %v241, %v240
    %v256 = vpack.c.b16 %v243, %v242
    %v257 = vpack.c.b16 %v245, %v244
    %v258 = vpack.c.b16 %v247, %v246
    %v259 = vpack.c.b16 %v249, %v248
    %v260 = vpack.c.b16 %v251, %v250
    %v261 = vpack.c.b16 %v253, %v252
    %270 = vmatprep.subr.bf16.mxu0 0
    %271 = vmatpush1.bf16.msra.mxu0 %v254
    %272 = vmatprep.subr.bf16.mxu0 0
    %273 = vmatpush1.bf16.msra.mxu0 %v255
    %274 = vmatprep.subr.bf16.mxu0 0
    %275 = vmatpush1.bf16.msra.mxu0 %v256
    %276 = vmatprep.subr.bf16.mxu0 0
    %277 = vmatpush1.bf16.msra.mxu0 %v257
    %278 = vmatprep.subr.bf16.mxu0 0
    %279 = vmatpush1.bf16.msra.mxu0 %v258
    %280 = vmatprep.subr.bf16.mxu0 0
    %281 = vmatpush1.bf16.msra.mxu0 %v259
    %282 = vmatprep.subr.bf16.mxu0 0
    %283 = vmatpush1.bf16.msra.mxu0 %v260
    %284 = vmatprep.subr.bf16.mxu0 0
    %285 = vmatpush1.bf16.msra.mxu0 %v261
    %286 = vmatprep.subr.bf16.mxu0 0
    %287 = vmatpush1.bf16.msra.mxu0 0
    %288 = vmatprep.subr.bf16.mxu0 0
    %289 = vmatpush1.bf16.msra.mxu0 0
    %290 = vmatprep.subr.bf16.mxu0 0
    %291 = vmatpush1.bf16.msra.mxu0 0
    %292 = vmatprep.subr.bf16.mxu0 0
    %293 = vmatpush1.bf16.msra.mxu0 0
    %294 = vmatprep.subr.bf16.mxu0 0
    %295 = vmatpush1.bf16.msra.mxu0 0
    %296 = vmatprep.subr.bf16.mxu0 0
    %297 = vmatpush1.bf16.msra.mxu0 0
    %298 = vmatprep.subr.bf16.mxu0 0
    %299 = vmatpush1.bf16.msra.mxu0 0
    %300 = vmatprep.subr.bf16.mxu0 0
    %301 = vmatpush1.bf16.msra.mxu0 0
    %302 = vmatprep.mubr.bf16.mxu0 0
    %303 = vmatmul.mubr.bf16.gmra.mrb[0].mxu0 %v198
    %v304 = vpop.f32.mrb[0].mxu0
    %v305 = vadd.f32 %v220, %v304
    %v306 = vpop.f32.mrb[0].mxu0
    %v307 = vpop.f32.mrb[0].mxu0
    %v308 = vpop.f32.mrb[0].mxu0
    %309 = vdwg.mxu0
    %s310 = sld [smem:[#allocation2]]
    %vm311 = vcmp.gt.f32.partialorder %v305, 0.0
    %v312 = vstv %s310
    %v313 = vmul.f32 %v312, %v305
    %v314 = vsel %vm311, %v305, %v313
    %v315 = vpack.c.bf16 %v314, %v314
    %v316 = vld [vmem:[#allocation9] sm:$0xf]
    %v317 = vld [vmem:[#allocation9 + $0x4] sm:$0xf]
    %v318 = vld [vmem:[#allocation9 + $0x8] sm:$0xf]
    %v319 = vld [vmem:[#allocation9 + $0xc] sm:$0xf]
    %v320 = vld [vmem:[#allocation9 + $0x10] sm:$0xf]
    %v321 = vld [vmem:[#allocation9 + $0x14] sm:$0xf]
    %v322 = vld [vmem:[#allocation9 + $0x18] sm:$0xf]
    %v323 = vld [vmem:[#allocation9 + $0x1c] sm:$0xf]
    %v324 = vld [vmem:[#allocation9 + $0x20] sm:$0xf]
    %v325 = vld [vmem:[#allocation9 + $0x24] sm:$0xf]
    %v326 = vld [vmem:[#allocation9 + $0x28] sm:$0xf]
    %v327 = vld [vmem:[#allocation9 + $0x2c] sm:$0xf]
    %v328 = vld [vmem:[#allocation9 + $0x30] sm:$0xf]
    %v329 = vld [vmem:[#allocation9 + $0x34] sm:$0xf]
    %v330 = vld [vmem:[#allocation9 + $0x38] sm:$0xf]
    %v331 = vld [vmem:[#allocation9 + $0x3c] sm:$0xf]
    %v332 = vld [vmem:[%s7] sm:$0x1]
    %v334 = vlaneseq
    %v335 = vshrl.u32 %v334, 7
    %v336 = vsub.s32 0, %v335
    %v337 = vrot.slane %v332, %v336
    %v355 = vunpack.c.l.b16 %v316
    %v356 = vunpack.c.l.b16 %v317
    %v357 = vunpack.c.l.b16 %v318
    %v358 = vunpack.c.l.b16 %v319
    %v359 = vunpack.c.l.b16 %v320
    %v360 = vunpack.c.l.b16 %v321
    %v361 = vunpack.c.l.b16 %v322
    %v362 = vunpack.c.l.b16 %v323
    %v363 = vunpack.c.l.b16 %v324
    %v364 = vunpack.c.l.b16 %v325
    %v365 = vunpack.c.l.b16 %v326
    %v366 = vunpack.c.l.b16 %v327
    %v367 = vunpack.c.l.b16 %v328
    %v368 = vunpack.c.l.b16 %v329
    %v369 = vunpack.c.l.b16 %v330
    %v370 = vunpack.c.l.b16 %v331
    %v371 = vpack.c.b16 %v356, %v355
    %v372 = vpack.c.b16 %v358, %v357
    %v373 = vpack.c.b16 %v360, %v359
    %v374 = vpack.c.b16 %v362, %v361
    %v375 = vpack.c.b16 %v364, %v363
    %v376 = vpack.c.b16 %v366, %v365
    %v377 = vpack.c.b16 %v368, %v367
    %v378 = vpack.c.b16 %v370, %v369
    %387 = vmatprep.subr.bf16.mxu0 0
    %388 = vmatpush1.bf16.msra.mxu0 %v371
    %389 = vmatprep.subr.bf16.mxu0 0
    %390 = vmatpush1.bf16.msra.mxu0 %v372
    %391 = vmatprep.subr.bf16.mxu0 0
    %392 = vmatpush1.bf16.msra.mxu0 %v373
    %393 = vmatprep.subr.bf16.mxu0 0
    %394 = vmatpush1.bf16.msra.mxu0 %v374
    %395 = vmatprep.subr.bf16.mxu0 0
    %396 = vmatpush1.bf16.msra.mxu0 %v375
    %397 = vmatprep.subr.bf16.mxu0 0
    %398 = vmatpush1.bf16.msra.mxu0 %v376
    %399 = vmatprep.subr.bf16.mxu0 0
    %400 = vmatpush1.bf16.msra.mxu0 %v377
    %401 = vmatprep.subr.bf16.mxu0 0
    %402 = vmatpush1.bf16.msra.mxu0 %v378
    %403 = vmatprep.subr.bf16.mxu0 0
    %404 = vmatpush1.bf16.msra.mxu0 0
    %405 = vmatprep.subr.bf16.mxu0 0
    %406 = vmatpush1.bf16.msra.mxu0 0
    %407 = vmatprep.subr.bf16.mxu0 0
    %408 = vmatpush1.bf16.msra.mxu0 0
    %409 = vmatprep.subr.bf16.mxu0 0
    %410 = vmatpush1.bf16.msra.mxu0 0
    %411 = vmatprep.subr.bf16.mxu0 0
    %412 = vmatpush1.bf16.msra.mxu0 0
    %413 = vmatprep.subr.bf16.mxu0 0
    %414 = vmatpush1.bf16.msra.mxu0 0
    %415 = vmatprep.subr.bf16.mxu0 0
    %416 = vmatpush1.bf16.msra.mxu0 0
    %417 = vmatprep.subr.bf16.mxu0 0
    %418 = vmatpush1.bf16.msra.mxu0 0
    %419 = vmatprep.mubr.bf16.mxu0 0
    %420 = vmatmul.mubr.bf16.gmra.mrb[0].mxu0 %v315
    %v421 = vpop.f32.mrb[0].mxu0
    %v422 = vadd.f32 %v337, %v421
    %v423 = vpop.f32.mrb[0].mxu0
    %v424 = vpop.f32.mrb[0].mxu0
    %v425 = vpop.f32.mrb[0].mxu0
    %426 = vdwg.mxu0
    %v427 = vxor.u32 %v422, 2147483648
    %v428 = vmul.f32 %v427, 1.442695
    %v429 = vpow.pop %v428
    %v430 = vadd.f32 %v429, 1.0
    %v431 = vrcp.pop %v430
    %v432 = vmul.f32 1.0, %v431
    %433 = vst [vmem:[#allocation11] sm:$0xff] %v432
    // Predicated region
    $region50: #{tpu_custom_call.1} parent=1 // pred_check
      _
    $region51: #{tpu_custom_call.1} parent=1 // pred_check_branch
      %435 = sbr.rel (0) target = $region53
    $region52: #{tpu_custom_call.1} parent=1 // pred_region
      %s437 = ssub.s32 128, 128
      %438 = vsyncadd [#allocation5], %s437
      %s440 = sshll.u32 [#allocation11], 4
      %s441 = int_to_ptr.vmem [resolvable:$true] %s440
      %443 = dma.vmem_to_hbm [thread:$0]  %s441, 128, %s8, [#allocation5]
    $region53: #{tpu_custom_call.1} parent=1 // pred_fallthru
      _
    // Predicated region
    $region54: #{tpu_custom_call.1} parent=1 // pred_check
      _
    $region55: #{tpu_custom_call.1} parent=1 // pred_check_branch
      %445 = sbr.rel (0) target = $region57
    $region56: #{tpu_custom_call.1} parent=1 // pred_region
      %446 = dma.done [#allocation5], 128
    $region57: #{tpu_custom_call.1} parent=1 // pred_fallthru
      _
    %447 = vsyncpa [#allocation4], 1
    %448 = vsyncpa [#allocation7], 1
    %449 = vsyncpa [#allocation10], 1
    %450 = vsyncpa [#allocation5], 1

</llo_original>
